<compile_context>
chip_gen: v7x
topology: tpu7x:2x2x1
jax: 0.10.0
libtpu: 0.0.40
codegen_flags: <defaults>
</compile_context>

<pallas_src>
import math

import jax
import jax.numpy as jnp
from jax.experimental import pallas as pl
from jax.experimental.pallas import tpu as pltpu


_XLA_FALLBACK_BYTES = 4 * 1024 * 1024   # below this, XLA's fused add wins.


def _add_pos_enc_kernel(tok_ref, pe_ref, out_ref):
    # tok_ref / out_ref: (1, tile_s, tile_nd); pe_ref: (tile_s, tile_nd).
    # Straight same-shape VPU add; the leading size-1 broadcast is free.
    out_ref[...] = tok_ref[...] + pe_ref[...]


def make_sinusoidal_encoding(max_sequence_length: int, token_dim: int) -> jnp.ndarray:
    """Deterministic sinusoidal table, identical to the PyTorch __init__."""
    if token_dim % 2 != 0:
        raise ValueError(f"token_dim must be even, got {token_dim}.")
    position = jnp.arange(max_sequence_length, dtype=jnp.float32)[:, None]        # (L, 1)
    div_term = jnp.exp(
        jnp.arange(0, token_dim, 2, dtype=jnp.float32) * (-math.log(10000.0) / token_dim)
    )                                                                              # (D/2,)
    enc = jnp.zeros((max_sequence_length, token_dim), dtype=jnp.float32)
    enc = enc.at[:, 0::2].set(jnp.sin(position * div_term))
    enc = enc.at[:, 1::2].set(jnp.cos(position * div_term))
    return enc


def _tile_budget_and_vmem_limit() -> tuple[int, int]:
    """(target tile bytes, scoped VMEM limit bytes), chosen per TPU generation."""
    vmem_cap = None
    try:
        vmem_cap = getattr(pltpu.get_tpu_info(), "vmem_capacity_bytes", None)
    except Exception:
        pass
    if vmem_cap is not None and vmem_cap <= 96 * 1024 * 1024:
        # v7x: only 64 MiB physical VMEM per TC, but 3.2 TB/s HBM -> bigger
        # (~4 MiB) tiles keep the ~0.35 us/step overhead under ~5-8%.  Scoped
        # VMEM raised to 40 MiB (double-buffered in+out+PE ~ 6x tile) while
        # staying well under the physical 64 MiB.
        return 4 * 1024 * 1024, 40 * 1024 * 1024
    # v5e / v6e (128 MiB physical VMEM): ~2 MiB tiles already reach ~85% of the
    # HBM roofline on v6e; 24 MiB scoped VMEM covers the double-buffered
    # working set with headroom on both (above v5e's 16 MiB default).
    return 2 * 1024 * 1024, 24 * 1024 * 1024


def _choose_tiles(seq_len: int, nd: int, itemsize: int, sublane: int,
                  target_bytes: int) -> tuple[int, int]:
    """Pick (tile_s, tile_nd) <= ~target_bytes that is layout-legal for the dtype."""
    # Whole (seq, nd) slab fits: one tile, always legal (full extents).
    if seq_len * nd * itemsize <= target_bytes:
        return seq_len, nd
    row_bytes = nd * itemsize
    rows = (target_bytes // row_bytes) // sublane * sublane
    if rows >= sublane:
        return min(rows, seq_len), nd
    # nd is so wide that even one sublane-group of rows blows the budget:
    # tile the feature axis too (multiples of 128 keep stores lane-dense).
    tile_s = seq_len if seq_len <= sublane else sublane
    lanes = (target_bytes // (tile_s * itemsize)) // 128 * 128
    tile_nd = max(128, min(lanes, nd))
    return tile_s, tile_nd


class SinusoidalEncoding:
    """JAX/Pallas port of the PyTorch SinusoidalEncoding module (dropout p=0)."""

    def __init__(self, max_sequence_length: int, token_dim: int, dropout: float = 0.0):
        self.max_sequence_length = max_sequence_length
        self.token_dim = token_dim
        self.dropout_p = dropout                      # p == 0.0 -> identity.
        self.positional_encoding = make_sinusoidal_encoding(max_sequence_length, token_dim)
        self._pe_cache: dict = {}                     # (S, slots, dtype, nd_pad) -> (S, nd_pad)

    # -- cached, pre-tiled / pre-cast / pre-padded PE table ------------------
    def _tiled_pe(self, seq_len: int, num_slots: int, dtype, nd_padded: int) -> jnp.ndarray:
        key = (seq_len, num_slots, jnp.dtype(dtype).name, nd_padded)
        if key not in self._pe_cache:
            pe = self.positional_encoding[:seq_len].astype(dtype)      # (S, D)
            pe_tiled = jnp.tile(pe, (1, num_slots))                    # (S, N*D); [s, n*D+d] == pe[s, d]
            pad = nd_padded - pe_tiled.shape[-1]
            if pad:
                pe_tiled = jnp.pad(pe_tiled, ((0, 0), (0, pad)))
            self._pe_cache[key] = pe_tiled
        return self._pe_cache[key]

    # -- forward --------------------------------------------------------------
    def __call__(self, tokens: jnp.ndarray, *,
                 use_pallas: bool | None = None,
                 donate_tokens: bool = False) -> jnp.ndarray:
        """tokens: (B, S, N, D).

        donate_tokens: only set True when `tokens` is actually donated at the
        jit boundary (donate_argnums); otherwise XLA inserts a defensive copy
        that erases the in-place benefit.
        """
        batch_size, seq_len, num_slots, token_dim = tokens.shape
        if seq_len > self.max_sequence_length:
            raise ValueError(
                f"Expected sequence length <= {self.max_sequence_length}, but got {seq_len}.")
        if token_dim != self.token_dim:
            raise ValueError(
                f"Expected token_dim to be {self.token_dim}, but got {token_dim}.")

        if use_pallas is None:
            # A standalone elementwise add is HBM-roofline-bound; at tiny sizes
            # XLA's fused broadcast-add beats any custom call.
            use_pallas = tokens.size * tokens.dtype.itemsize >= _XLA_FALLBACK_BYTES
        if not use_pallas:
            pe = self.positional_encoding[:seq_len].astype(tokens.dtype)
            return tokens + pe[None, :, None, :]

        # Lane-dense layout: fold the slot axis into the feature axis, pad the
        # folded width up to a multiple of 128 so stores are unmasked vst.
        nd = num_slots * token_dim
        nd_padded = ((nd + 127) // 128) * 128
        pe_tiled = self._tiled_pe(seq_len, num_slots, tokens.dtype, nd_padded)

        tok_flat = tokens.reshape(batch_size, seq_len, nd)             # free reshape
        if nd_padded != nd:
            tok_flat = jnp.pad(tok_flat, ((0, 0), (0, 0), (0, nd_padded - nd)))

        itemsize = tokens.dtype.itemsize
        sublane = max(8, 32 // itemsize)               # 8 f32 / 16 bf16 / 32 int8-fp8
        target_bytes, vmem_limit = _tile_budget_and_vmem_limit()
        tile_s, tile_nd = _choose_tiles(seq_len, nd_padded, itemsize, sublane, target_bytes)

        # Batch innermost so the PE block index (which ignores the batch axis)
        # is constant across consecutive grid steps -> Pallas skips the re-DMA.
        # Leading (seq-tile) axis carries the megacore split on v7x.
        grid = (pl.cdiv(seq_len, tile_s), pl.cdiv(nd_padded, tile_nd), batch_size)

        out_flat = pl.pallas_call(
            _add_pos_enc_kernel,
            out_shape=jax.ShapeDtypeStruct((batch_size, seq_len, nd_padded), tokens.dtype),
            grid_spec=pltpu.PrefetchScalarGridSpec(
                num_scalar_prefetch=0,
                grid=grid,
                in_specs=[
                    # one batch element x one (seq, feature) tile per grid step
                    pl.BlockSpec((1, tile_s, tile_nd), lambda s, n, b: (b, s, n)),
                    # PE tile: block index independent of the inner batch axis
                    # -> fetched from HBM once per unique tile, not per batch.
                    pl.BlockSpec((tile_s, tile_nd), lambda s, n, b: (s, n)),
                ],
                out_specs=pl.BlockSpec((1, tile_s, tile_nd), lambda s, n, b: (b, s, n)),
            ),
            compiler_params=pltpu.CompilerParams(
                dimension_semantics=("parallel", "parallel", "parallel"),
                vmem_limit_bytes=vmem_limit),
            # In-place add only when the caller really donates the buffer.
            input_output_aliases=({0: 0} if donate_tokens else {}),
        )(tok_flat, pe_tiled)

        if nd_padded != nd:
            out_flat = out_flat[..., :nd]
        return out_flat.reshape(batch_size, seq_len, num_slots, token_dim)


if __name__ == "__main__":
    # Small shapes consistent with the module's forward.
    batch_size = 2
    seq_len = 8
    num_slots = 4
    token_dim = 32          # N*D = 128 -> lane-dense last block dim, no padding
    max_sequence_length = 16

    key = jax.random.PRNGKey(0)
    tokens = jax.random.normal(
        key, (batch_size, seq_len, num_slots, token_dim), dtype=jnp.float32)

    module = SinusoidalEncoding(max_sequence_length, token_dim)

    # Pure-JAX reference (same math as the PyTorch forward).
    ref = tokens + module.positional_encoding[:seq_len][None, :, None, :]
    ref = jax.block_until_ready(ref)

    # Force the Pallas path (the auto heuristic would fall back at this tiny size).
    out = module(tokens, use_pallas=True)
    out = jax.block_until_ready(out)

    assert out.shape == tokens.shape
    assert jnp.allclose(out, ref, atol=1e-6), "mismatch vs reference"

    print("KERNEL_OK")
</pallas_src>

<mosaic_0001>
module attributes {stable_mosaic.version = 11 : i64} {
  func.func @_add_pos_enc_kernel(%arg0: i32, %arg1: i32, %arg2: i32, %arg3: memref<1x8x128xf32, #tpu.memory_space<vmem>>, %arg4: memref<8x128xf32, #tpu.memory_space<vmem>>, %arg5: memref<1x8x128xf32, #tpu.memory_space<vmem>>) attributes {dimension_semantics = [#tpu.dimension_semantics<parallel>, #tpu.dimension_semantics<parallel>, #tpu.dimension_semantics<parallel>], iteration_bounds = array<i64: 1, 1, 2>, scalar_prefetch = 0 : i64, scratch_operands = 0 : i64, tpu.core_type = #tpu.core_type<tc>, window_params = [{transform_indices = @transform_0, window_bounds = array<i64: 1, 8, 128>}, {transform_indices = @transform_1, window_bounds = array<i64: 8, 128>}, {transform_indices = @transform_2, window_bounds = array<i64: 1, 8, 128>}]} {
    %c0 = arith.constant 0 : index
    %c0_0 = arith.constant 0 : index
    %c0_1 = arith.constant 0 : index
    %0 = vector.load %arg3[%c0, %c0_0, %c0_1] : memref<1x8x128xf32, #tpu.memory_space<vmem>>, vector<1x8x128xf32>
    %c0_2 = arith.constant 0 : index
    %c0_3 = arith.constant 0 : index
    %1 = vector.load %arg4[%c0_2, %c0_3] : memref<8x128xf32, #tpu.memory_space<vmem>>, vector<8x128xf32>
    %2 = vector.shape_cast %1 : vector<8x128xf32> to vector<1x8x128xf32>
    %3 = arith.addf %0, %2 : vector<1x8x128xf32>
    %c0_4 = arith.constant 0 : index
    %c0_5 = arith.constant 0 : index
    %c0_6 = arith.constant 0 : index
    %4 = vector.load %arg5[%c0_4, %c0_5, %c0_6] : memref<1x8x128xf32, #tpu.memory_space<vmem>>, vector<1x8x128xf32>
    tpu.vector_store %arg5[%c0_4, %c0_5, %c0_6], %3 {strides = array<i32>} : memref<1x8x128xf32, #tpu.memory_space<vmem>>, vector<1x8x128xf32>,
    return
  }
  func.func @transform_0(%arg0: i32, %arg1: i32, %arg2: i32) -> (i32, i32, i32) {
    %c0_i32 = arith.constant 0 : i32
    return %arg2, %arg0, %arg1 : i32, i32, i32
  }
  func.func @transform_1(%arg0: i32, %arg1: i32, %arg2: i32) -> (i32, i32) {
    %c0_i32 = arith.constant 0 : i32
    return %arg0, %arg1 : i32, i32
  }
  func.func @transform_2(%arg0: i32, %arg1: i32, %arg2: i32) -> (i32, i32, i32) {
    %c0_i32 = arith.constant 0 : i32
    return %arg2, %arg0, %arg1 : i32, i32, i32
  }
}

</mosaic_0001>

<llo_original>
// kernel: tpu_custom_call.1
$region0: #{tpu_custom_call.1}
  #allocation0 [shape = 'u32[]', space=smem, size = 0x4, offset = 0x4, fixed_abs, tag = 'smem constant byte address 0x4 - core index']
  #allocation1 [shape = 'u32[144,128]{1,0:T(1,128)}', space=vmem, size = 0x12000, scoped, tag = 'internal scratch']
  %s0 = inlined_call_operand.hbm [shape: f32[2,8,128], index: 0, kind: input, shape index: {}]
  %s1 = inlined_call_operand.hbm [shape: f32[8,128], index: 1, kind: input, shape index: {}]
  %s2 = inlined_call_operand.hbm [shape: f32[2,8,128], index: 2, kind: output, shape index: {}]
  %s3 = sld [smem:[#allocation0]]
  $region49: #{tpu_custom_call.1} parent=0
    _
  %s5 = ssub.s32 1, %s3
  %s6 = scalar_select 0, %s5, %s3
  $region1: #{tpu_custom_call.1} parent=0
    #allocation2 [shape = 'u8[8192]{0}', space=vmem, size = 0x2000, scoped, tag = 'input window, operand 0']
    #allocation3 [shape = 's32[2]{0}', space=sflag, size = 0x8, scoped, tag = 'scoped memory for tpu_custom_call.1']
    #allocation4 [shape = 's32[2]{0}', space=sflag, size = 0x8, scoped, tag = 'scoped memory for tpu_custom_call.1']
    #allocation5 [shape = 'u8[4096]{0}', space=vmem, size = 0x1000, scoped, tag = 'input window, operand 1, single buffered']
    #allocation6 [shape = 's32[1]{0}', space=sflag, size = 0x4, scoped, tag = 'scoped memory for tpu_custom_call.1']
    #allocation7 [shape = 'u8[8192]{0}', space=vmem, size = 0x2000, scoped, tag = 'output window, operand 0']
    %7 = vsyncpa [#allocation3], 0
    %s8 = scalar_lea.sflag [#allocation3], 1
    %9 = vsyncpa %s8, 0
    %10 = vsyncpa [#allocation6], 0
    %11 = vsyncpa [#allocation4], 0
    %s12 = scalar_lea.sflag [#allocation4], 1
    %13 = vsyncpa %s12, 0
    loop: start=0, step=1, limit=4
    $region2: #{tpu_custom_call.1} parent=1 // loop_pre_header
      _
    $region3: #{tpu_custom_call.1} parent=1 // loop_header
      %s15 = sphi 0, %s19
      %p16 = scmp.ge.s32.totalorder %s15, 4
      %s22 = sphi 0, %s41
      %s23 = sphi 0, %s37
      %s24 = sphi 0, %s33
      %s25 = sphi 0, %s22
      %s26 = sphi 0, %s23
      %s27 = sphi 0, %s24
      %s28 = sphi 0, %s25
      %s29 = sphi 0, %s26
      %s30 = sphi 0, %s27
      %s48 = sphi 0, %s50
      %s51 = sphi 0, %s48
      %s52 = sphi 0, %s51
      %s68 = sphi 0, %s52
      %s76 = sphi 0, %s78
      %s79 = sphi 0, %s76
      %s80 = sphi 0, %s79
      %s96 = sphi 0, %s80
      %s106 = sphi 0, %s108
      %s109 = sphi 0, %s106
      %s110 = sphi 0, %s109
      %s126 = sphi 0, %s110
    $region4: #{tpu_custom_call.1} parent=1 // loop_header_branch
      %18 = sbr.rel (%p16) target = $region8
    $region5: #{tpu_custom_call.1} parent=1 // loop_body
      %s20 = ssub.s32 %s15, 1
      %s21 = ssub.s32 %s15, 2
      %s31 = sadd.s32 1, %s24
      %p32 = scmp.ge.s32.totalorder %s31, 2
      %s33 = scalar_select %p32, 0, %s31
      %s34 = sadd.s32 1, %s23
      %s35 = scalar_select %p32, %s34, %s23
      %p36 = scmp.ge.s32.totalorder %s35, 1
      %s37 = scalar_select %p36, 0, %s35
      %s38 = sadd.s32 1, %s22
      %s39 = scalar_select %p36, %s38, %s22
      %p40 = scmp.ge.s32.totalorder %s39, 1
      %s41 = scalar_select %p40, 0, %s39
      %s42 = ssub.s32 %s24, %s33
      %s43 = ssub.s32 %s22, %s41
      %s44 = sor.u32 %s42, %s43
      %s45 = ssub.s32 %s23, %s37
      %s46 = sor.u32 %s44, %s45
      %p47 = scmp.eq.s32.totalorder %s46, 0
      %s49 = sadd.s32 %s48, 1
      %s50 = scalar_select %p47, %s48, %s49
      %p53 = pneg %p47
      %p54 = scmp.eq.s32.totalorder %s15, 1
      %p55 = por %p53, %p54
      %p56 = scmp.ne.s32.totalorder %s48, %s51
      %p57 = scmp.eq.s32.totalorder %s15, 0
      %p58 = por %p56, %p57
      %p59 = scmp.ne.s32.totalorder %s48, %s51
      %p60 = scmp.eq.s32.totalorder %s20, 1
      %p61 = por %p59, %p60
      %p62 = scmp.ne.s32.totalorder %s51, %s52
      %p63 = scmp.eq.s32.totalorder %s20, 0
      %p64 = por %p62, %p63
      %p65 = scmp.ne.s32.totalorder %s51, %s52
      %p66 = scmp.eq.s32.totalorder %s21, 1
      %p67 = por %p65, %p66
      %p69 = scmp.ne.s32.totalorder %s52, %s68
      %p70 = scmp.eq.s32.totalorder %s21, 0
      %p71 = por %p69, %p70
      %s72 = ssub.s32 %s22, %s41
      %s73 = ssub.s32 %s23, %s37
      %s74 = sor.u32 %s72, %s73
      %p75 = scmp.eq.s32.totalorder %s74, 0
      %s77 = sadd.s32 %s76, 1
      %s78 = scalar_select %p75, %s76, %s77
      %p81 = pneg %p75
      %p82 = scmp.eq.s32.totalorder %s15, 1
      %p83 = por %p81, %p82
      %p84 = scmp.ne.s32.totalorder %s76, %s79
      %p85 = scmp.eq.s32.totalorder %s15, 0
      %p86 = por %p84, %p85
      %p87 = scmp.ne.s32.totalorder %s76, %s79
      %p88 = scmp.eq.s32.totalorder %s20, 1
      %p89 = por %p87, %p88
      %p90 = scmp.ne.s32.totalorder %s79, %s80
      %p91 = scmp.eq.s32.totalorder %s20, 0
      %p92 = por %p90, %p91
      %p93 = scmp.ne.s32.totalorder %s79, %s80
      %p94 = scmp.eq.s32.totalorder %s21, 1
      %p95 = por %p93, %p94
      %p97 = scmp.ne.s32.totalorder %s80, %s96
      %p98 = scmp.eq.s32.totalorder %s21, 0
      %p99 = por %p97, %p98
      %s100 = ssub.s32 %s24, %s33
      %s101 = ssub.s32 %s22, %s41
      %s102 = sor.u32 %s100, %s101
      %s103 = ssub.s32 %s23, %s37
      %s104 = sor.u32 %s102, %s103
      %p105 = scmp.eq.s32.totalorder %s104, 0
      %s107 = sadd.s32 %s106, 1
      %s108 = scalar_select %p105, %s106, %s107
      %p111 = pneg %p105
      %p112 = scmp.eq.s32.totalorder %s15, 1
      %p113 = por %p111, %p112
      %p114 = scmp.ne.s32.totalorder %s106, %s109
      %p115 = scmp.eq.s32.totalorder %s15, 0
      %p116 = por %p114, %p115
      %p117 = scmp.ne.s32.totalorder %s106, %s109
      %p118 = scmp.eq.s32.totalorder %s20, 1
      %p119 = por %p117, %p118
      %p120 = scmp.ne.s32.totalorder %s109, %s110
      %p121 = scmp.eq.s32.totalorder %s20, 0
      %p122 = por %p120, %p121
      %p123 = scmp.ne.s32.totalorder %s109, %s110
      %p124 = scmp.eq.s32.totalorder %s21, 1
      %p125 = por %p123, %p124
      %p127 = scmp.ne.s32.totalorder %s110, %s126
      %p128 = scmp.eq.s32.totalorder %s21, 0
      %p129 = por %p127, %p128
      %p130 = scmp.le.s32.totalorder 1, %s15
      %p131 = scmp.lt.s32.totalorder %s15, 3
      %p132 = pnand %p130, %p131
      %p133 = pneg %p132
      // Predicated region
      $region9: #{tpu_custom_call.1} parent=5 // pred_check
        _
      $region10: #{tpu_custom_call.1} parent=5 // pred_check_branch
        %135 = sbr.rel (%p132) target = $region12
      $region11: #{tpu_custom_call.1} parent=5 // pred_region
        %s136 = ssub.s32 %s15, 1
        // Predicated region
        $region13: #{tpu_custom_call.1} parent=11 // pred_check
          %p137 = pneg %p92
        $region14: #{tpu_custom_call.1} parent=11 // pred_check_branch
          %139 = sbr.rel (%p137) target = $region16
        $region15: #{tpu_custom_call.1} parent=11 // pred_region
          %s141 = ssub.s32 128, 128
          %142 = vsyncadd [#allocation6], %s141
          %s143 = sadd.s32 %s26, %s25
          %s144 = smul.addr %s143, 128
          %s145 = scalar_lea.hbm %s1, %s144
          %s147 = sshll.u32 [#allocation5], 4
          %s148 = int_to_ptr.vmem [resolvable:$true] %s147
          %150 = dma.hbm_to_vmem [thread:$0]  %s145, 128, %s148, [#allocation6]
        $region16: #{tpu_custom_call.1} parent=11 // pred_fallthru
          _
      $region12: #{tpu_custom_call.1} parent=5 // pred_fallthru
        _
      %p151 = scmp.lt.s32.totalorder %s15, 2
      // Predicated region
      $region17: #{tpu_custom_call.1} parent=5 // pred_check
        %p152 = pneg %p151
      $region18: #{tpu_custom_call.1} parent=5 // pred_check_branch
        %154 = sbr.rel (%p152) target = $region20
      $region19: #{tpu_custom_call.1} parent=5 // pred_region
        // Predicated region
        $region21: #{tpu_custom_call.1} parent=19 // pred_check
          %p155 = pneg %p58
        $region22: #{tpu_custom_call.1} parent=19 // pred_check_branch
          %157 = sbr.rel (%p155) target = $region24
        $region23: #{tpu_custom_call.1} parent=19 // pred_region
          %s158 = sand.u32 %s48, 1
          %s159 = scalar_lea.sflag [#allocation3], %s158
          %s160 = sand.u32 %s48, 1
          %s161 = smul.addr %s160, 8
          %s162 = scalar_lea.vmem [#allocation2], %s161
          %s164 = ssub.s32 128, 128
          %165 = vsyncadd %s159, %s164
          %s166 = sadd.s32 %s23, %s22
          %s167 = sadd.s32 %s166, %s24
          %s168 = smul.addr %s167, 128
          %s169 = scalar_lea.hbm %s0, %s168
          %s171 = sshll.u32 %s162, 4
          %s172 = int_to_ptr.vmem [resolvable:$true] %s171
          %174 = dma.hbm_to_vmem [thread:$0]  %s169, 128, %s172, %s159
        $region24: #{tpu_custom_call.1} parent=19 // pred_fallthru
          _
      $region20: #{tpu_custom_call.1} parent=5 // pred_fallthru
        _
      %p175 = scmp.le.s32.totalorder 1, %s15
      %p176 = scmp.lt.s32.totalorder %s15, 3
      %p177 = pnand %p175, %p176
      %p178 = pneg %p177
      // Predicated region
      $region25: #{tpu_custom_call.1} parent=5 // pred_check
        _
      $region26: #{tpu_custom_call.1} parent=5 // pred_check_branch
        %180 = sbr.rel (%p177) target = $region28
      $region27: #{tpu_custom_call.1} parent=5 // pred_region
        %s181 = ssub.s32 %s15, 1
        %s182 = sand.u32 %s51, 1
        %s183 = scalar_lea.sflag [#allocation3], %s182
        %s184 = sand.u32 %s51, 1
        %s185 = smul.addr %s184, 8
        %s186 = scalar_lea.vmem [#allocation2], %s185
        // Predicated region
        $region29: #{tpu_custom_call.1} parent=27 // pred_check
          %p187 = pneg %p64
        $region30: #{tpu_custom_call.1} parent=27 // pred_check_branch
          %189 = sbr.rel (%p187) target = $region32
        $region31: #{tpu_custom_call.1} parent=27 // pred_region
          %190 = dma.done %s183, 128
        $region32: #{tpu_custom_call.1} parent=27 // pred_fallthru
          _
        // Predicated region
        $region33: #{tpu_custom_call.1} parent=27 // pred_check
          %p191 = pneg %p92
        $region34: #{tpu_custom_call.1} parent=27 // pred_check_branch
          %193 = sbr.rel (%p191) target = $region36
        $region35: #{tpu_custom_call.1} parent=27 // pred_region
          %194 = dma.done [#allocation6], 128
        $region36: #{tpu_custom_call.1} parent=27 // pred_fallthru
          _
        %s195 = sand.u32 %s51, 1
        %s196 = scalar_lea.sflag [#allocation3], %s195
        %s197 = sand.u32 %s51, 1
        %s198 = smul.addr %s197, 8
        %s199 = scalar_lea.vmem [#allocation2], %s198
        %p200 = pneg %p64
        %p201 = pneg %p61
        %p202 = pneg %p92
        %p203 = pneg %p89
        %p204 = pneg %p122
        %p205 = pneg %p119
        %s206 = sand.u32 %s109, 1
        %s207 = scalar_lea.sflag [#allocation4], %s206
        %s208 = sand.u32 %s109, 1
        %s209 = smul.addr %s208, 8
        %s210 = scalar_lea.vmem [#allocation7], %s209
        %v211 = vld [vmem:[%s186] sm:$0xff]
        %v212 = vld [vmem:[#allocation5] sm:$0xff]
        %v213 = vadd.f32 %v211, %v212
        %214 = vst [vmem:[%s210] sm:$0xff] %v213
        %s215 = sand.u32 %s109, 1
        %s216 = scalar_lea.sflag [#allocation4], %s215
        %s217 = sand.u32 %s109, 1
        %s218 = smul.addr %s217, 8
        %s219 = scalar_lea.vmem [#allocation7], %s218
        // Predicated region
        $region37: #{tpu_custom_call.1} parent=27 // pred_check
          %p220 = pneg %p119
        $region38: #{tpu_custom_call.1} parent=27 // pred_check_branch
          %222 = sbr.rel (%p220) target = $region40
        $region39: #{tpu_custom_call.1} parent=27 // pred_region
          %s224 = ssub.s32 128, 128
          %225 = vsyncadd %s216, %s224
          %s226 = sadd.s32 %s26, %s25
          %s227 = sadd.s32 %s226, %s27
          %s228 = smul.addr %s227, 128
          %s229 = scalar_lea.hbm %s2, %s228
          %s231 = sshll.u32 %s219, 4
          %s232 = int_to_ptr.vmem [resolvable:$true] %s231
          %234 = dma.vmem_to_hbm [thread:$0]  %s232, 128, %s229, %s216
        $region40: #{tpu_custom_call.1} parent=27 // pred_fallthru
          _
      $region28: #{tpu_custom_call.1} parent=5 // pred_fallthru
        _
      %p235 = scmp.le.s32.totalorder 2, %s15
      // Predicated region
      $region41: #{tpu_custom_call.1} parent=5 // pred_check
        %p236 = pneg %p235
      $region42: #{tpu_custom_call.1} parent=5 // pred_check_branch
        %238 = sbr.rel (%p236) target = $region44
      $region43: #{tpu_custom_call.1} parent=5 // pred_region
        %s239 = ssub.s32 %s15, 2
        // Predicated region
        $region45: #{tpu_custom_call.1} parent=43 // pred_check
          %p240 = pneg %p125
        $region46: #{tpu_custom_call.1} parent=43 // pred_check_branch
          %242 = sbr.rel (%p240) target = $region48
        $region47: #{tpu_custom_call.1} parent=43 // pred_region
          %s243 = sand.u32 %s110, 1
          %s244 = scalar_lea.sflag [#allocation4], %s243
          %s245 = sand.u32 %s110, 1
          %s246 = smul.addr %s245, 8
          %s247 = scalar_lea.vmem [#allocation7], %s246
          %248 = dma.done %s244, 128
        $region48: #{tpu_custom_call.1} parent=43 // pred_fallthru
          _
      $region44: #{tpu_custom_call.1} parent=5 // pred_fallthru
        _
    $region6: #{tpu_custom_call.1} parent=1 // loop_footer
      %s19 = sadd.s32 1, %s15
    $region7: #{tpu_custom_call.1} parent=1 // loop_footer_branch
      %14 = sbr.rel target = $region3
    $region8: #{tpu_custom_call.1} parent=1 // loop_exit
      _
    %249 = vsyncpa [#allocation3], 1
    %s250 = scalar_lea.sflag [#allocation3], 1
    %251 = vsyncpa %s250, 1
    %252 = vsyncpa [#allocation6], 1
    %253 = vsyncpa [#allocation4], 1
    %s254 = scalar_lea.sflag [#allocation4], 1
    %255 = vsyncpa %s254, 1

</llo_original>
